<compile_context>
chip_gen: v6e
topology: v6e:2x2x1
jax: 0.10.0
libtpu: 0.0.40
codegen_flags: <defaults>
</compile_context>

<pallas_src>
import jax
import jax.numpy as jnp
from jax.experimental import pallas as pl
from jax.experimental.pallas import tpu as pltpu

_LANE = 128


def _gelu_tanh(x):
    # tanh-approximate GELU (maps onto the EUP tanh unit).
    # TODO(synk): torch nn.GELU() default is the exact erf form; the tanh
    # approximation (max abs diff ~3e-3) is used to stay on guaranteed TPU ops.
    c = 0.7978845608028654  # sqrt(2/pi)
    return 0.5 * x * (1.0 + jnp.tanh(c * (x + 0.044715 * x * x * x)))


def _mlp_kernel(x_ref, w1_ref, b1_ref, w2_ref, b2_ref, o_ref):
    # x_ref:  (C, T)         activation tile (spatial = lanes)
    # w1_ref: (hidden, C)    fc1 weight  (VMEM-resident)
    # b1_ref: (hidden, 1)    fc1 bias    (f32)
    # w2_ref: (out, hidden)  fc2 weight  (VMEM-resident)
    # b2_ref: (out, 1)       fc2 bias    (f32)
    # o_ref:  (out, T)       output tile (lane-dense)
    h = jnp.dot(w1_ref[...], x_ref[...], preferred_element_type=jnp.float32)
    h = _gelu_tanh(h + b1_ref[...])                       # (hidden, T), f32
    y = jnp.dot(w2_ref[...], h.astype(w2_ref.dtype),
                preferred_element_type=jnp.float32)
    o_ref[...] = (y + b2_ref[...]).astype(o_ref.dtype)
    # drop=0.0 (module default) -> nn.Dropout is the identity; nothing to do.


def mlp_forward(x, w1, b1, w2, b2, *, compute_dtype=None, spatial_tile=512):
    """Mlp.forward on NCHW input using 1x1-conv (per-pixel linear) weights.

    x:  (B, C, H, W)
    w1: (hidden, C, 1, 1) or (hidden, C);   b1: (hidden,)
    w2: (out, hidden, 1, 1) or (out, hidden); b2: (out,)
    returns (B, out, H, W)
    """
    B, C, H, W = x.shape
    hidden = w1.shape[0]
    out_f = w2.shape[0]
    HW = H * W
    out_dtype = x.dtype

    # 1x1-conv weights -> matrices: contiguous reshapes, no transpose copies.
    w1m = w1.reshape(hidden, C)
    w2m = w2.reshape(out_f, hidden)
    b1m = b1.reshape(hidden, 1).astype(jnp.float32)
    b2m = b2.reshape(out_f, 1).astype(jnp.float32)

    if compute_dtype is not None:
        x = x.astype(compute_dtype)
        w1m = w1m.astype(compute_dtype)
        w2m = w2m.astype(compute_dtype)

    # Lane-dense spatial tile: multiple of 128, capped for VMEM headroom
    # (double-buffered (C,T) in + (out,T) out tiles stay tiny even on v7x).
    T = min(spatial_tile, pl.cdiv(HW, _LANE) * _LANE)
    HW_pad = pl.cdiv(HW, T) * T

    x3 = x.reshape(B, C, HW)          # free view: NCHW -> (B, C, H*W)
    if HW_pad != HW:
        x3 = jnp.pad(x3, ((0, 0), (0, 0), (0, HW_pad - HW)))

    grid = (B, HW_pad // T)
    isz = jnp.dtype(x3.dtype).itemsize
    flops = 2 * B * HW_pad * (C * hidden + hidden * out_f)
    bytes_accessed = (isz * B * HW_pad * C                 # activations in
                      + jnp.dtype(out_dtype).itemsize * B * HW_pad * out_f
                      + isz * (hidden * C + out_f * hidden)
                      + 4 * (hidden + out_f))

    out = pl.pallas_call(
        _mlp_kernel,
        out_shape=jax.ShapeDtypeStruct((B, out_f, HW_pad), out_dtype),
        grid_spec=pltpu.PrefetchScalarGridSpec(
            num_scalar_prefetch=0,
            grid=grid,
            in_specs=[
                pl.BlockSpec((None, C, T), lambda b, t: (b, 0, t)),    # x tile
                pl.BlockSpec((hidden, C), lambda b, t: (0, 0)),        # W1 (resident)
                pl.BlockSpec((hidden, 1), lambda b, t: (0, 0)),        # b1 (resident)
                pl.BlockSpec((out_f, hidden), lambda b, t: (0, 0)),    # W2 (resident)
                pl.BlockSpec((out_f, 1), lambda b, t: (0, 0)),         # b2 (resident)
            ],
            out_specs=pl.BlockSpec((None, out_f, T), lambda b, t: (b, 0, t)),
        ),
        compiler_params=pltpu.CompilerParams(
            dimension_semantics=("parallel", "parallel"),
        ),
        cost_estimate=pl.CostEstimate(
            flops=int(flops),
            transcendentals=int(B * HW_pad * hidden),
            bytes_accessed=int(bytes_accessed),
        ),
    )(x3, w1m, b1m, w2m, b2m)

    if HW_pad != HW:
        out = out[:, :, :HW]
    return out.reshape(B, out_f, H, W)


if __name__ == "__main__":
    # Small, module-consistent shapes: NCHW activations, mlp_ratio=4 style.
    B, C, H, W = 2, 32, 16, 16
    hidden, out_f = 128, 32

    key = jax.random.PRNGKey(0)
    kx, k1, kb1, k2, kb2 = jax.random.split(key, 5)
    x = jax.random.normal(kx, (B, C, H, W), dtype=jnp.float32)
    w1 = jax.random.normal(k1, (hidden, C, 1, 1), dtype=jnp.float32) * 0.05
    b1 = jax.random.normal(kb1, (hidden,), dtype=jnp.float32) * 0.05
    w2 = jax.random.normal(k2, (out_f, hidden, 1, 1), dtype=jnp.float32) * 0.05
    b2 = jax.random.normal(kb2, (out_f,), dtype=jnp.float32) * 0.05

    y = jax.jit(mlp_forward)(x, w1, b1, w2, b2)
    y = jax.block_until_ready(y)

    # Pure-JAX reference: 1x1 conv == per-pixel linear, same GELU formula.
    xm = x.transpose(0, 2, 3, 1).reshape(-1, C)
    h_ref = _gelu_tanh(xm @ w1.reshape(hidden, C).T + b1)
    ref = (h_ref @ w2.reshape(out_f, hidden).T + b2).reshape(
        B, H, W, out_f).transpose(0, 3, 1, 2)

    assert y.shape == (B, out_f, H, W)
    assert jnp.allclose(y, ref, atol=1e-4, rtol=1e-4), float(
        jnp.max(jnp.abs(y - ref)))
    print("KERNEL_OK")
</pallas_src>

<mosaic_0001>
module attributes {stable_mosaic.version = 11 : i64} {
  func.func @_mlp_kernel(%arg0: i32, %arg1: i32, %arg2: memref<1x32x256xf32, #tpu.memory_space<vmem>>, %arg3: memref<128x32xf32, #tpu.memory_space<vmem>>, %arg4: memref<128x1xf32, #tpu.memory_space<vmem>>, %arg5: memref<32x128xf32, #tpu.memory_space<vmem>>, %arg6: memref<32x1xf32, #tpu.memory_space<vmem>>, %arg7: memref<1x32x256xf32, #tpu.memory_space<vmem>>) attributes {dimension_semantics = [#tpu.dimension_semantics<parallel>, #tpu.dimension_semantics<parallel>], iteration_bounds = array<i64: 2, 1>, scalar_prefetch = 0 : i64, scratch_operands = 0 : i64, tpu.core_type = #tpu.core_type<tc>, window_params = [{transform_indices = @transform_0, window_bounds = array<i64: 1, 32, 256>}, {pipeline_mode = #tpu.pipeline_mode<synchronous>, transform_indices = @transform_1, window_bounds = array<i64: 128, 32>}, {pipeline_mode = #tpu.pipeline_mode<synchronous>, transform_indices = @transform_2, window_bounds = array<i64: 128, 1>}, {pipeline_mode = #tpu.pipeline_mode<synchronous>, transform_indices = @transform_3, window_bounds = array<i64: 32, 128>}, {pipeline_mode = #tpu.pipeline_mode<synchronous>, transform_indices = @transform_4, window_bounds = array<i64: 32, 1>}, {transform_indices = @transform_5, window_bounds = array<i64: 1, 32, 256>}]} {
    %c0 = arith.constant 0 : index
    %c0_0 = arith.constant 0 : index
    %0 = vector.load %arg3[%c0, %c0_0] : memref<128x32xf32, #tpu.memory_space<vmem>>, vector<128x32xf32>
    %c0_1 = arith.constant 0 : index
    %c0_2 = arith.constant 0 : index
    %c0_3 = arith.constant 0 : index
    %1 = vector.load %arg2[%c0_1, %c0_2, %c0_3] : memref<1x32x256xf32, #tpu.memory_space<vmem>>, vector<1x32x256xf32>
    %2 = vector.shape_cast %1 : vector<1x32x256xf32> to vector<32x256xf32>
    %cst = arith.constant dense<0.000000e+00> : vector<128x256xf32>
    %3 = tpu.matmul %0, %2, %cst {dimension_numbers = #tpu.dot_dimension_numbers<[1], [0], [0], [1], [0, 0, 1, 1], [], []>} : vector<128x32xf32>, vector<32x256xf32>, vector<128x256xf32> -> vector<128x256xf32>
    %c0_4 = arith.constant 0 : index
    %c0_5 = arith.constant 0 : index
    %4 = vector.load %arg4[%c0_4, %c0_5] : memref<128x1xf32, #tpu.memory_space<vmem>>, vector<128x1xf32>
    %5 = vector.broadcast %4 : vector<128x1xf32> to vector<128x256xf32>
    %6 = arith.addf %3, %5 : vector<128x256xf32>
    %cst_6 = arith.constant 5.000000e-01 : f32
    %7 = vector.broadcast %cst_6 : f32 to vector<128x256xf32>
    %8 = arith.mulf %7, %6 : vector<128x256xf32>
    %cst_7 = arith.constant 4.471500e-02 : f32
    %9 = vector.broadcast %cst_7 : f32 to vector<128x256xf32>
    %10 = arith.mulf %9, %6 : vector<128x256xf32>
    %11 = arith.mulf %10, %6 : vector<128x256xf32>
    %12 = arith.mulf %11, %6 : vector<128x256xf32>
    %13 = arith.addf %6, %12 : vector<128x256xf32>
    %cst_8 = arith.constant 0.797884583 : f32
    %14 = vector.broadcast %cst_8 : f32 to vector<128x256xf32>
    %15 = arith.mulf %14, %13 : vector<128x256xf32>
    %16 = math.tanh %15 : vector<128x256xf32>
    %cst_9 = arith.constant 1.000000e+00 : f32
    %17 = vector.broadcast %cst_9 : f32 to vector<128x256xf32>
    %18 = arith.addf %17, %16 : vector<128x256xf32>
    %19 = arith.mulf %8, %18 : vector<128x256xf32>
    %c0_10 = arith.constant 0 : index
    %c0_11 = arith.constant 0 : index
    %20 = vector.load %arg5[%c0_10, %c0_11] : memref<32x128xf32, #tpu.memory_space<vmem>>, vector<32x128xf32>
    %cst_12 = arith.constant dense<0.000000e+00> : vector<32x256xf32>
    %21 = tpu.matmul %20, %19, %cst_12 {dimension_numbers = #tpu.dot_dimension_numbers<[1], [0], [0], [1], [0, 0, 1, 1], [], []>} : vector<32x128xf32>, vector<128x256xf32>, vector<32x256xf32> -> vector<32x256xf32>
    %c0_13 = arith.constant 0 : index
    %c0_14 = arith.constant 0 : index
    %22 = vector.load %arg6[%c0_13, %c0_14] : memref<32x1xf32, #tpu.memory_space<vmem>>, vector<32x1xf32>
    %23 = vector.broadcast %22 : vector<32x1xf32> to vector<32x256xf32>
    %24 = arith.addf %21, %23 : vector<32x256xf32>
    %c0_15 = arith.constant 0 : index
    %c0_16 = arith.constant 0 : index
    %c0_17 = arith.constant 0 : index
    %25 = vector.load %arg7[%c0_15, %c0_16, %c0_17] : memref<1x32x256xf32, #tpu.memory_space<vmem>>, vector<1x32x256xf32>
    %26 = vector.shape_cast %25 : vector<1x32x256xf32> to vector<32x256xf32>
    %27 = vector.shape_cast %24 : vector<32x256xf32> to vector<1x32x256xf32>
    tpu.vector_store %arg7[%c0_15, %c0_16, %c0_17], %27 {strides = array<i32>} : memref<1x32x256xf32, #tpu.memory_space<vmem>>, vector<1x32x256xf32>,
    return
  }
  func.func @transform_0(%arg0: i32, %arg1: i32) -> (i32, i32, i32) {
    %c0_i32 = arith.constant 0 : i32
    %c0_i32_0 = arith.constant 0 : i32
    return %arg0, %c0_i32, %arg1 : i32, i32, i32
  }
  func.func @transform_1(%arg0: i32, %arg1: i32) -> (i32, i32) {
    %c0_i32 = arith.constant 0 : i32
    %c0_i32_0 = arith.constant 0 : i32
    %c0_i32_1 = arith.constant 0 : i32
    return %c0_i32, %c0_i32_0 : i32, i32
  }
  func.func @transform_2(%arg0: i32, %arg1: i32) -> (i32, i32) {
    %c0_i32 = arith.constant 0 : i32
    %c0_i32_0 = arith.constant 0 : i32
    %c0_i32_1 = arith.constant 0 : i32
    return %c0_i32, %c0_i32_0 : i32, i32
  }
  func.func @transform_3(%arg0: i32, %arg1: i32) -> (i32, i32) {
    %c0_i32 = arith.constant 0 : i32
    %c0_i32_0 = arith.constant 0 : i32
    %c0_i32_1 = arith.constant 0 : i32
    return %c0_i32, %c0_i32_0 : i32, i32
  }
  func.func @transform_4(%arg0: i32, %arg1: i32) -> (i32, i32) {
    %c0_i32 = arith.constant 0 : i32
    %c0_i32_0 = arith.constant 0 : i32
    %c0_i32_1 = arith.constant 0 : i32
    return %c0_i32, %c0_i32_0 : i32, i32
  }
  func.func @transform_5(%arg0: i32, %arg1: i32) -> (i32, i32, i32) {
    %c0_i32 = arith.constant 0 : i32
    %c0_i32_0 = arith.constant 0 : i32
    return %arg0, %c0_i32, %arg1 : i32, i32, i32
  }
}

</mosaic_0001>

<llo_original>
// kernel: mlp_forward.1
$region0: #{mlp_forward.1}
  #allocation0 [shape = 'u32[]', space=smem, size = 0x4, offset = 0x4, fixed_abs, tag = 'smem constant byte address 0x4 - core index']
  #allocation1 [shape = 'u32[144,128]{1,0:T(1,128)}', space=vmem, size = 0x12000, scoped, tag = 'internal scratch']
  %s0 = inlined_call_operand.vmem [shape: f32[2,32,256], index: 0, kind: input, shape index: {}]
  %s1 = inlined_call_operand.vmem [shape: f32[128,32], index: 1, kind: input, shape index: {}]
  %s2 = inlined_call_operand.vmem [shape: f32[128,1], index: 2, kind: input, shape index: {}]
  %s3 = inlined_call_operand.vmem [shape: f32[32,128], index: 3, kind: input, shape index: {}]
  %s4 = inlined_call_operand.vmem [shape: f32[32,1], index: 4, kind: input, shape index: {}]
  %s5 = inlined_call_operand.vmem [shape: f32[2,32,256], index: 5, kind: output, shape index: {}]
  %s6 = sld [smem:[#allocation0]]
  $region53: #{mlp_forward.1} parent=0
    _
  %s8 = ssub.s32 1, %s6
  %s9 = scalar_select 0, %s8, %s6
  loop: start=0, step=1, limit=4
  $region2: #{mlp_forward.1} parent=0 // loop_pre_header
    _
  $region3: #{mlp_forward.1} parent=0 // loop_header
    %s11 = sphi 0, %s15
    %p12 = scmp.ge.s32.totalorder %s11, 4
    %s18 = sphi 0, %s30
    %s19 = sphi 0, %s26
    %s20 = sphi 0, %s18
    %s21 = sphi 0, %s19
    %s22 = sphi 0, %s20
    %s23 = sphi 0, %s21
    %s35 = sphi 0, %s37
    %s38 = sphi 0, %s35
    %s39 = sphi 0, %s38
    %s55 = sphi 0, %s39
    %s59 = sphi 0, %s59
    %s61 = sphi 0, %s59
    %s62 = sphi 0, %s61
    %s76 = sphi 0, %s62
    %s80 = sphi 0, %s80
    %s82 = sphi 0, %s80
    %s83 = sphi 0, %s82
    %s97 = sphi 0, %s83
    %s101 = sphi 0, %s101
    %s103 = sphi 0, %s101
    %s104 = sphi 0, %s103
    %s118 = sphi 0, %s104
    %s122 = sphi 0, %s122
    %s124 = sphi 0, %s122
    %s125 = sphi 0, %s124
    %s139 = sphi 0, %s125
    %s147 = sphi 0, %s149
    %s150 = sphi 0, %s147
    %s151 = sphi 0, %s150
    %s167 = sphi 0, %s151
  $region4: #{mlp_forward.1} parent=0 // loop_header_branch
    %14 = sbr.rel (%p12) target = $region8
  $region5: #{mlp_forward.1} parent=0 // loop_body
    %s16 = ssub.s32 %s11, 1
    %s17 = ssub.s32 %s11, 2
    %s24 = sadd.s32 1, %s19
    %p25 = scmp.ge.s32.totalorder %s24, 1
    %s26 = scalar_select %p25, 0, %s24
    %s27 = sadd.s32 1, %s18
    %s28 = scalar_select %p25, %s27, %s18
    %p29 = scmp.ge.s32.totalorder %s28, 2
    %s30 = scalar_select %p29, 0, %s28
    %s31 = ssub.s32 %s18, %s30
    %s32 = ssub.s32 %s19, %s26
    %s33 = sor.u32 %s31, %s32
    %p34 = scmp.eq.s32.totalorder %s33, 0
    %s36 = sadd.s32 %s35, 1
    %s37 = scalar_select %p34, %s35, %s36
    %p40 = pneg %p34
    %p41 = scmp.eq.s32.totalorder %s11, 1
    %p42 = por %p40, %p41
    %p43 = scmp.ne.s32.totalorder %s35, %s38
    %p44 = scmp.eq.s32.totalorder %s11, 0
    %p45 = por %p43, %p44
    %p46 = scmp.ne.s32.totalorder %s35, %s38
    %p47 = scmp.eq.s32.totalorder %s16, 1
    %p48 = por %p46, %p47
    %p49 = scmp.ne.s32.totalorder %s38, %s39
    %p50 = scmp.eq.s32.totalorder %s16, 0
    %p51 = por %p49, %p50
    %p52 = scmp.ne.s32.totalorder %s38, %s39
    %p53 = scmp.eq.s32.totalorder %s17, 1
    %p54 = por %p52, %p53
    %p56 = scmp.ne.s32.totalorder %s39, %s55
    %p57 = scmp.eq.s32.totalorder %s17, 0
    %p58 = por %p56, %p57
    %s60 = sadd.s32 %s59, 1
    %p63 = scmp.eq.s32.totalorder %s11, 1
    %p64 = scmp.ne.s32.totalorder %s59, %s61
    %p65 = scmp.eq.s32.totalorder %s11, 0
    %p66 = por %p64, %p65
    %p67 = scmp.ne.s32.totalorder %s59, %s61
    %p68 = scmp.eq.s32.totalorder %s16, 1
    %p69 = por %p67, %p68
    %p70 = scmp.ne.s32.totalorder %s61, %s62
    %p71 = scmp.eq.s32.totalorder %s16, 0
    %p72 = por %p70, %p71
    %p73 = scmp.ne.s32.totalorder %s61, %s62
    %p74 = scmp.eq.s32.totalorder %s17, 1
    %p75 = por %p73, %p74
    %p77 = scmp.ne.s32.totalorder %s62, %s76
    %p78 = scmp.eq.s32.totalorder %s17, 0
    %p79 = por %p77, %p78
    %s81 = sadd.s32 %s80, 1
    %p84 = scmp.eq.s32.totalorder %s11, 1
    %p85 = scmp.ne.s32.totalorder %s80, %s82
    %p86 = scmp.eq.s32.totalorder %s11, 0
    %p87 = por %p85, %p86
    %p88 = scmp.ne.s32.totalorder %s80, %s82
    %p89 = scmp.eq.s32.totalorder %s16, 1
    %p90 = por %p88, %p89
    %p91 = scmp.ne.s32.totalorder %s82, %s83
    %p92 = scmp.eq.s32.totalorder %s16, 0
    %p93 = por %p91, %p92
    %p94 = scmp.ne.s32.totalorder %s82, %s83
    %p95 = scmp.eq.s32.totalorder %s17, 1
    %p96 = por %p94, %p95
    %p98 = scmp.ne.s32.totalorder %s83, %s97
    %p99 = scmp.eq.s32.totalorder %s17, 0
    %p100 = por %p98, %p99
    %s102 = sadd.s32 %s101, 1
    %p105 = scmp.eq.s32.totalorder %s11, 1
    %p106 = scmp.ne.s32.totalorder %s101, %s103
    %p107 = scmp.eq.s32.totalorder %s11, 0
    %p108 = por %p106, %p107
    %p109 = scmp.ne.s32.totalorder %s101, %s103
    %p110 = scmp.eq.s32.totalorder %s16, 1
    %p111 = por %p109, %p110
    %p112 = scmp.ne.s32.totalorder %s103, %s104
    %p113 = scmp.eq.s32.totalorder %s16, 0
    %p114 = por %p112, %p113
    %p115 = scmp.ne.s32.totalorder %s103, %s104
    %p116 = scmp.eq.s32.totalorder %s17, 1
    %p117 = por %p115, %p116
    %p119 = scmp.ne.s32.totalorder %s104, %s118
    %p120 = scmp.eq.s32.totalorder %s17, 0
    %p121 = por %p119, %p120
    %s123 = sadd.s32 %s122, 1
    %p126 = scmp.eq.s32.totalorder %s11, 1
    %p127 = scmp.ne.s32.totalorder %s122, %s124
    %p128 = scmp.eq.s32.totalorder %s11, 0
    %p129 = por %p127, %p128
    %p130 = scmp.ne.s32.totalorder %s122, %s124
    %p131 = scmp.eq.s32.totalorder %s16, 1
    %p132 = por %p130, %p131
    %p133 = scmp.ne.s32.totalorder %s124, %s125
    %p134 = scmp.eq.s32.totalorder %s16, 0
    %p135 = por %p133, %p134
    %p136 = scmp.ne.s32.totalorder %s124, %s125
    %p137 = scmp.eq.s32.totalorder %s17, 1
    %p138 = por %p136, %p137
    %p140 = scmp.ne.s32.totalorder %s125, %s139
    %p141 = scmp.eq.s32.totalorder %s17, 0
    %p142 = por %p140, %p141
    %s143 = ssub.s32 %s18, %s30
    %s144 = ssub.s32 %s19, %s26
    %s145 = sor.u32 %s143, %s144
    %p146 = scmp.eq.s32.totalorder %s145, 0
    %s148 = sadd.s32 %s147, 1
    %s149 = scalar_select %p146, %s147, %s148
    %p152 = pneg %p146
    %p153 = scmp.eq.s32.totalorder %s11, 1
    %p154 = por %p152, %p153
    %p155 = scmp.ne.s32.totalorder %s147, %s150
    %p156 = scmp.eq.s32.totalorder %s11, 0
    %p157 = por %p155, %p156
    %p158 = scmp.ne.s32.totalorder %s147, %s150
    %p159 = scmp.eq.s32.totalorder %s16, 1
    %p160 = por %p158, %p159
    %p161 = scmp.ne.s32.totalorder %s150, %s151
    %p162 = scmp.eq.s32.totalorder %s16, 0
    %p163 = por %p161, %p162
    %p164 = scmp.ne.s32.totalorder %s150, %s151
    %p165 = scmp.eq.s32.totalorder %s17, 1
    %p166 = por %p164, %p165
    %p168 = scmp.ne.s32.totalorder %s151, %s167
    %p169 = scmp.eq.s32.totalorder %s17, 0
    %p170 = por %p168, %p169
    %p171 = scmp.le.s32.totalorder 1, %s11
    %p172 = scmp.lt.s32.totalorder %s11, 3
    %p173 = pnand %p171, %p172
    %p174 = pneg %p173
    // Predicated region
    $region9: #{mlp_forward.1} parent=5 // pred_check
      _
    $region10: #{mlp_forward.1} parent=5 // pred_check_branch
      %176 = sbr.rel (%p173) target = $region12
    $region11: #{mlp_forward.1} parent=5 // pred_region
      %s177 = ssub.s32 %s11, 1
      // Predicated region
      $region13: #{mlp_forward.1} parent=11 // pred_check
        %p178 = pneg %p72
      $region14: #{mlp_forward.1} parent=11 // pred_check_branch
        %180 = sbr.rel (%p178) target = $region16
      $region15: #{mlp_forward.1} parent=11 // pred_region
        _
      $region16: #{mlp_forward.1} parent=11 // pred_fallthru
        _
      // Predicated region
      $region17: #{mlp_forward.1} parent=11 // pred_check
        %p181 = pneg %p93
      $region18: #{mlp_forward.1} parent=11 // pred_check_branch
        %183 = sbr.rel (%p181) target = $region20
      $region19: #{mlp_forward.1} parent=11 // pred_region
        _
      $region20: #{mlp_forward.1} parent=11 // pred_fallthru
        _
      // Predicated region
      $region21: #{mlp_forward.1} parent=11 // pred_check
        %p184 = pneg %p114
      $region22: #{mlp_forward.1} parent=11 // pred_check_branch
        %186 = sbr.rel (%p184) target = $region24
      $region23: #{mlp_forward.1} parent=11 // pred_region
        _
      $region24: #{mlp_forward.1} parent=11 // pred_fallthru
        _
      // Predicated region
      $region25: #{mlp_forward.1} parent=11 // pred_check
        %p187 = pneg %p135
      $region26: #{mlp_forward.1} parent=11 // pred_check_branch
        %189 = sbr.rel (%p187) target = $region28
      $region27: #{mlp_forward.1} parent=11 // pred_region
        _
      $region28: #{mlp_forward.1} parent=11 // pred_fallthru
        _
    $region12: #{mlp_forward.1} parent=5 // pred_fallthru
      _
    %p190 = scmp.lt.s32.totalorder %s11, 2
    // Predicated region
    $region29: #{mlp_forward.1} parent=5 // pred_check
      %p191 = pneg %p190
    $region30: #{mlp_forward.1} parent=5 // pred_check_branch
      %193 = sbr.rel (%p191) target = $region32
    $region31: #{mlp_forward.1} parent=5 // pred_region
      // Predicated region
      $region33: #{mlp_forward.1} parent=31 // pred_check
        %p194 = pneg %p45
      $region34: #{mlp_forward.1} parent=31 // pred_check_branch
        %196 = sbr.rel (%p194) target = $region36
      $region35: #{mlp_forward.1} parent=31 // pred_region
        %s197 = smul.u32 2, %s19
        %p198 = scmp.lt.s32.totalorder %s18, 1
        %s199 = scalar_select %p198, %s18, 1
        %p200 = scmp.lt.s32.totalorder %s197, 1
        %s201 = scalar_select %p200, %s197, 1
        %s202 = smul.addr %s199, 8
        %s203 = sadd.s32 %s201, %s202
        %s204 = smul.addr %s203, 8
        %s205 = scalar_lea.vmem %s0, %s204
        %s206 = smul.u32 2, %s19
      $region36: #{mlp_forward.1} parent=31 // pred_fallthru
        _
    $region32: #{mlp_forward.1} parent=5 // pred_fallthru
      _
    %p207 = scmp.le.s32.totalorder 1, %s11
    %p208 = scmp.lt.s32.totalorder %s11, 3
    %p209 = pnand %p207, %p208
    %p210 = pneg %p209
    // Predicated region
    $region37: #{mlp_forward.1} parent=5 // pred_check
      _
    $region38: #{mlp_forward.1} parent=5 // pred_check_branch
      %212 = sbr.rel (%p209) target = $region40
    $region39: #{mlp_forward.1} parent=5 // pred_region
      %s213 = ssub.s32 %s11, 1
      %s214 = smul.u32 2, %s21
      %p215 = scmp.lt.s32.totalorder %s20, 1
      %s216 = scalar_select %p215, %s20, 1
      %p217 = scmp.lt.s32.totalorder %s214, 1
      %s218 = scalar_select %p217, %s214, 1
      %s219 = smul.addr %s216, 8
      %s220 = sadd.s32 %s218, %s219
      %s221 = smul.addr %s220, 8
      %s222 = scalar_lea.vmem %s0, %s221
      %p223 = pneg %p51
      %p224 = pneg %p48
      %p225 = pneg %p72
      %p226 = pneg %p69
      %p227 = pneg %p93
      %p228 = pneg %p90
      %p229 = pneg %p114
      %p230 = pneg %p111
      %p231 = pneg %p135
      %p232 = pneg %p132
      %p233 = pneg %p163
      %p234 = pneg %p160
      %s235 = smul.u32 2, %s21
      %p236 = scmp.lt.s32.totalorder %s20, 1
      %s237 = scalar_select %p236, %s20, 1
      %p238 = scmp.lt.s32.totalorder %s235, 1
      %s239 = scalar_select %p238, %s235, 1
      %s240 = smul.addr %s237, 8
      %s241 = sadd.s32 %s239, %s240
      %s242 = smul.addr %s241, 8
      %s243 = scalar_lea.vmem %s5, %s242
      %s244 = smul.u32 2, %s21
      %p245 = scmp.lt.s32.totalorder %s20, 1
      %s246 = scalar_select %p245, %s20, 1
      %p247 = scmp.lt.s32.totalorder %s244, 1
      %s248 = scalar_select %p247, %s244, 1
      %s249 = smul.addr %s246, 8
      %s250 = sadd.s32 %s248, %s249
      %s251 = smul.addr %s250, 8
      %s252 = scalar_lea.vmem %s0, %s251
      %s253 = smul.u32 2, %s21
      %s254 = smul.u32 2, %s21
      %p255 = scmp.lt.s32.totalorder %s20, 1
      %s256 = scalar_select %p255, %s20, 1
      %p257 = scmp.lt.s32.totalorder %s254, 1
      %s258 = scalar_select %p257, %s254, 1
      %s259 = smul.addr %s256, 8
      %s260 = sadd.s32 %s258, %s259
      %s261 = smul.addr %s260, 8
      %s262 = scalar_lea.vmem %s5, %s261
      %s263 = smul.u32 2, %s21
      %v264 = vld [vmem:[%s1] sm:$0xff]
      %v265 = vld [vmem:[%s1 + $0x8] sm:$0xff]
      %v266 = vld [vmem:[%s1 + $0x10] sm:$0xff]
      %v267 = vld [vmem:[%s1 + $0x18] sm:$0xff]
      %v268 = vld [vmem:[%s1 + $0x20] sm:$0xff]
      %v269 = vld [vmem:[%s1 + $0x28] sm:$0xff]
      %v270 = vld [vmem:[%s1 + $0x30] sm:$0xff]
      %v271 = vld [vmem:[%s1 + $0x38] sm:$0xff]
      %v272 = vld [vmem:[%s1 + $0x40] sm:$0xff]
      %v273 = vld [vmem:[%s1 + $0x48] sm:$0xff]
      %v274 = vld [vmem:[%s1 + $0x50] sm:$0xff]
      %v275 = vld [vmem:[%s1 + $0x58] sm:$0xff]
      %v276 = vld [vmem:[%s1 + $0x60] sm:$0xff]
      %v277 = vld [vmem:[%s1 + $0x68] sm:$0xff]
      %v278 = vld [vmem:[%s1 + $0x70] sm:$0xff]
      %v279 = vld [vmem:[%s1 + $0x78] sm:$0xff]
      %v280 = vld [vmem:[%s252] sm:$0xff]
      %v281 = vld [vmem:[%s252 + $0x8] sm:$0xff]
      %v282 = vld [vmem:[%s252 + $0x10] sm:$0xff]
      %v283 = vld [vmem:[%s252 + $0x18] sm:$0xff]
      %v284 = vld [vmem:[%s252 + $0x20] sm:$0xff]
      %v285 = vld [vmem:[%s252 + $0x28] sm:$0xff]
      %v286 = vld [vmem:[%s252 + $0x30] sm:$0xff]
      %v287 = vld [vmem:[%s252 + $0x38] sm:$0xff]
      %v288 = vld [vmem:[%s2] sm:$0xff]
      %v289 = vld [vmem:[%s2 + $0x8] sm:$0xff]
      %v290 = vld [vmem:[%s2 + $0x10] sm:$0xff]
      %v291 = vld [vmem:[%s2 + $0x18] sm:$0xff]
      %v292 = vld [vmem:[%s2 + $0x20] sm:$0xff]
      %v293 = vld [vmem:[%s2 + $0x28] sm:$0xff]
      %v294 = vld [vmem:[%s2 + $0x30] sm:$0xff]
      %v295 = vld [vmem:[%s2 + $0x38] sm:$0xff]
      %v296 = vld [vmem:[%s2 + $0x40] sm:$0xff]
      %v297 = vld [vmem:[%s2 + $0x48] sm:$0xff]
      %v298 = vld [vmem:[%s2 + $0x50] sm:$0xff]
      %v299 = vld [vmem:[%s2 + $0x58] sm:$0xff]
      %v300 = vld [vmem:[%s2 + $0x60] sm:$0xff]
      %v301 = vld [vmem:[%s2 + $0x68] sm:$0xff]
      %v302 = vld [vmem:[%s2 + $0x70] sm:$0xff]
      %v303 = vld [vmem:[%s2 + $0x78] sm:$0xff]
      %305 = vset.pattern.permute.xlu0 0
      %306 = vperm.xlu0 %305, %v288
      %v307 = vpop.permute.xlu0 %306
      %310 = vset.pattern.permute.xlu0 0
      %311 = vperm.xlu0 %310, %v289
      %v312 = vpop.permute.xlu0 %311
      %315 = vset.pattern.permute.xlu0 0
      %316 = vperm.xlu0 %315, %v290
      %v317 = vpop.permute.xlu0 %316
      %320 = vset.pattern.permute.xlu0 0
      %321 = vperm.xlu0 %320, %v291
      %v322 = vpop.permute.xlu0 %321
      %325 = vset.pattern.permute.xlu0 0
      %326 = vperm.xlu0 %325, %v292
      %v327 = vpop.permute.xlu0 %326
      %330 = vset.pattern.permute.xlu0 0
      %331 = vperm.xlu0 %330, %v293
      %v332 = vpop.permute.xlu0 %331
      %335 = vset.pattern.permute.xlu0 0
      %336 = vperm.xlu0 %335, %v294
      %v337 = vpop.permute.xlu0 %336
      %340 = vset.pattern.permute.xlu0 0
      %341 = vperm.xlu0 %340, %v295
      %v342 = vpop.permute.xlu0 %341
      %345 = vset.pattern.permute.xlu0 0
      %346 = vperm.xlu0 %345, %v296
      %v347 = vpop.permute.xlu0 %346
      %350 = vset.pattern.permute.xlu0 0
      %351 = vperm.xlu0 %350, %v297
      %v352 = vpop.permute.xlu0 %351
      %355 = vset.pattern.permute.xlu0 0
      %356 = vperm.xlu0 %355, %v298
      %v357 = vpop.permute.xlu0 %356
      %360 = vset.pattern.permute.xlu0 0
      %361 = vperm.xlu0 %360, %v299
      %v362 = vpop.permute.xlu0 %361
      %365 = vset.pattern.permute.xlu0 0
      %366 = vperm.xlu0 %365, %v300
      %v367 = vpop.permute.xlu0 %366
      %370 = vset.pattern.permute.xlu0 0
      %371 = vperm.xlu0 %370, %v301
      %v372 = vpop.permute.xlu0 %371
      %375 = vset.pattern.permute.xlu0 0
      %376 = vperm.xlu0 %375, %v302
      %v377 = vpop.permute.xlu0 %376
      %380 = vset.pattern.permute.xlu0 0
      %381 = vperm.xlu0 %380, %v303
      %v382 = vpop.permute.xlu0 %381
      %vm384 = vcmask 261120
      %v386 = vsel %vm384, %v264, 0
      %v389 = vsel %vm384, %v265, 0
      %v392 = vsel %vm384, %v266, 0
      %v395 = vsel %vm384, %v267, 0
      %v398 = vsel %vm384, %v268, 0
      %v401 = vsel %vm384, %v269, 0
      %v404 = vsel %vm384, %v270, 0
      %v407 = vsel %vm384, %v271, 0
      %v410 = vsel %vm384, %v272, 0
      %v413 = vsel %vm384, %v273, 0
      %v416 = vsel %vm384, %v274, 0
      %v419 = vsel %vm384, %v275, 0
      %v422 = vsel %vm384, %v276, 0
      %v425 = vsel %vm384, %v277, 0
      %v428 = vsel %vm384, %v278, 0
      %v431 = vsel %vm384, %v279, 0
      %433 = vmatprep.subr.mxu0 0.0
      %434 = vmatpush1.msra.mxu0 0.0
      %435 = vmatprep.subr.mxu0 0.0
      %436 = vmatpush1.msra.mxu0 0.0
      %437 = vmatprep.subr.mxu0 0.0
      %438 = vmatpush1.msra.mxu0 0.0
      %439 = vmatprep.subr.mxu0 0.0
      %440 = vmatpush1.msra.mxu0 0.0
      %441 = vmatprep.subr.mxu0 0.0
      %442 = vmatpush1.msra.mxu0 0.0
      %443 = vmatprep.subr.mxu0 0.0
      %444 = vmatpush1.msra.mxu0 0.0
      %445 = vmatprep.subr.mxu0 0.0
      %446 = vmatpush1.msra.mxu0 0.0
      %447 = vmatprep.subr.mxu0 0.0
      %448 = vmatpush1.msra.mxu0 0.0
      %449 = vmatprep.subr.mxu0 0.0
      %450 = vmatpush1.msra.mxu0 0.0
      %451 = vmatprep.subr.mxu0 0.0
      %452 = vmatpush1.msra.mxu0 0.0
      %453 = vmatprep.subr.mxu0 0.0
      %454 = vmatpush1.msra.mxu0 0.0
      %455 = vmatprep.subr.mxu0 0.0
      %456 = vmatpush1.msra.mxu0 0.0
      %457 = vmatprep.subr.mxu0 %v287
      %458 = vmatpush1.msra.mxu0 %v286
      %459 = vmatprep.subr.mxu0 %v285
      %460 = vmatpush1.msra.mxu0 %v284
      %461 = vmatprep.subr.mxu0 %v283
      %462 = vmatpush1.msra.mxu0 %v282
      %463 = vmatprep.subr.mxu0 %v281
      %464 = vmatpush1.msra.mxu0 %v280
      %465 = vmatprep.subr.mxu0 0.0
      %466 = vmatpush2.msra.mxu0 0.0
      %467 = vmatprep.subr.mxu0 0.0
      %468 = vmatpush2.msra.mxu0 0.0
      %469 = vmatprep.subr.mxu0 0.0
      %470 = vmatpush2.msra.mxu0 0.0
      %471 = vmatprep.subr.mxu0 0.0
      %472 = vmatpush2.msra.mxu0 0.0
      %473 = vmatprep.subr.mxu0 0.0
      %474 = vmatpush2.msra.mxu0 0.0
      %475 = vmatprep.subr.mxu0 0.0
      %476 = vmatpush2.msra.mxu0 0.0
      %477 = vmatprep.subr.mxu0 0.0
      %478 = vmatpush2.msra.mxu0 0.0
      %479 = vmatprep.subr.mxu0 0.0
      %480 = vmatpush2.msra.mxu0 0.0
      %481 = vmatprep.subr.mxu0 0.0
      %482 = vmatpush2.msra.mxu0 0.0
      %483 = vmatprep.subr.mxu0 0.0
      %484 = vmatpush2.msra.mxu0 0.0
      %485 = vmatprep.subr.mxu0 0.0
      %486 = vmatpush2.msra.mxu0 0.0
      %487 = vmatprep.subr.mxu0 0.0
      %488 = vmatpush2.msra.mxu0 0.0
      %489 = vmatprep.subr.mxu0 0.0
      %490 = vmatpush2.msra.mxu0 0.0
      %491 = vmatprep.subr.mxu0 0.0
      %492 = vmatpush2.msra.mxu0 0.0
      %493 = vmatprep.subr.mxu0 0.0
      %494 = vmatpush2.msra.mxu0 0.0
      %495 = vmatprep.subr.mxu0 0.0
      %496 = vmatpush2.msra.mxu0 0.0
      %497 = vmatprep.mubr.f32.mxu0 0.0
      %498 = vmatmul.mubr.f32.gmra.mxu0 %v386
      %v499 = vpop.f32.mrf.mxu0
      %v500 = vadd.f32 %v307, %v499
      %v501 = vpop.f32.mrf.mxu0
      %v502 = vadd.f32 %v307, %v501
      %503 = vmatprep.mubr.f32.mxu0 0.0
      %504 = vmatmul.mubr.f32.gmra.mxu0 %v389
      %v505 = vpop.f32.mrf.mxu0
      %v506 = vadd.f32 %v312, %v505
      %v507 = vpop.f32.mrf.mxu0
      %v508 = vadd.f32 %v312, %v507
      %509 = vmatprep.mubr.f32.mxu0 0.0
      %510 = vmatmul.mubr.f32.gmra.mxu0 %v392
      %v511 = vpop.f32.mrf.mxu0
      %v512 = vadd.f32 %v317, %v511
      %v513 = vpop.f32.mrf.mxu0
      %v514 = vadd.f32 %v317, %v513
      %515 = vmatprep.mubr.f32.mxu0 0.0
      %516 = vmatmul.mubr.f32.gmra.mxu0 %v395
      %v517 = vpop.f32.mrf.mxu0
      %v518 = vadd.f32 %v322, %v517
      %v519 = vpop.f32.mrf.mxu0
      %v520 = vadd.f32 %v322, %v519
      %521 = vmatprep.mubr.f32.mxu0 0.0
      %522 = vmatmul.mubr.f32.gmra.mxu0 %v398
      %v523 = vpop.f32.mrf.mxu0
      %v524 = vadd.f32 %v327, %v523
      %v525 = vpop.f32.mrf.mxu0
      %v526 = vadd.f32 %v327, %v525
      %527 = vmatprep.mubr.f32.mxu0 0.0
      %528 = vmatmul.mubr.f32.gmra.mxu0 %v401
      %v529 = vpop.f32.mrf.mxu0
      %v530 = vadd.f32 %v332, %v529
      %v531 = vpop.f32.mrf.mxu0
      %v532 = vadd.f32 %v332, %v531
      %533 = vmatprep.mubr.f32.mxu0 0.0
      %534 = vmatmul.mubr.f32.gmra.mxu0 %v404
      %v535 = vpop.f32.mrf.mxu0
      %v536 = vadd.f32 %v337, %v535
      %v537 = vpop.f32.mrf.mxu0
      %v538 = vadd.f32 %v337, %v537
      %539 = vmatprep.mubr.f32.mxu0 0.0
      %540 = vmatmul.mubr.f32.gmra.mxu0 %v407
      %v541 = vpop.f32.mrf.mxu0
      %v542 = vadd.f32 %v342, %v541
      %v543 = vpop.f32.mrf.mxu0
      %v544 = vadd.f32 %v342, %v543
      %545 = vmatprep.mubr.f32.mxu0 0.0
      %546 = vmatmul.mubr.f32.gmra.mxu0 %v410
      %v547 = vpop.f32.mrf.mxu0
      %v548 = vadd.f32 %v347, %v547
      %v549 = vpop.f32.mrf.mxu0
      %v550 = vadd.f32 %v347, %v549
      %551 = vmatprep.mubr.f32.mxu0 0.0
      %552 = vmatmul.mubr.f32.gmra.mxu0 %v413
      %v553 = vpop.f32.mrf.mxu0
      %v554 = vadd.f32 %v352, %v553
      %v555 = vpop.f32.mrf.mxu0
      %v556 = vadd.f32 %v352, %v555
      %557 = vmatprep.mubr.f32.mxu0 0.0
      %558 = vmatmul.mubr.f32.gmra.mxu0 %v416
      %v559 = vpop.f32.mrf.mxu0
      %v560 = vadd.f32 %v357, %v559
      %v561 = vpop.f32.mrf.mxu0
      %v562 = vadd.f32 %v357, %v561
      %563 = vmatprep.mubr.f32.mxu0 0.0
      %564 = vmatmul.mubr.f32.gmra.mxu0 %v419
      %v565 = vpop.f32.mrf.mxu0
      %v566 = vadd.f32 %v362, %v565
      %v567 = vpop.f32.mrf.mxu0
      %v568 = vadd.f32 %v362, %v567
      %569 = vmatprep.mubr.f32.mxu0 0.0
      %570 = vmatmul.mubr.f32.gmra.mxu0 %v422
      %v571 = vpop.f32.mrf.mxu0
      %v572 = vadd.f32 %v367, %v571
      %v573 = vpop.f32.mrf.mxu0
      %v574 = vadd.f32 %v367, %v573
      %575 = vmatprep.mubr.f32.mxu0 0.0
      %576 = vmatmul.mubr.f32.gmra.mxu0 %v425
      %v577 = vpop.f32.mrf.mxu0
      %v578 = vadd.f32 %v372, %v577
      %v579 = vpop.f32.mrf.mxu0
      %v580 = vadd.f32 %v372, %v579
      %581 = vmatprep.mubr.f32.mxu0 0.0
      %582 = vmatmul.mubr.f32.gmra.mxu0 %v428
      %v583 = vpop.f32.mrf.mxu0
      %v584 = vadd.f32 %v377, %v583
      %v585 = vpop.f32.mrf.mxu0
      %v586 = vadd.f32 %v377, %v585
      %587 = vmatprep.mubr.f32.mxu0 0.0
      %588 = vmatmul.mubr.f32.gmra.mxu0 %v431
      %v589 = vpop.f32.mrf.mxu0
      %v590 = vadd.f32 %v382, %v589
      %v591 = vpop.f32.mrf.mxu0
      %v592 = vadd.f32 %v382, %v591
      %593 = vdwg.mxu0
      %v594 = vmul.f32 %v500, 0.5
      %v595 = vmul.f32 %v502, 0.5
      %v596 = vmul.f32 %v506, 0.5
      %v597 = vmul.f32 %v508, 0.5
      %v598 = vmul.f32 %v512, 0.5
      %v599 = vmul.f32 %v514, 0.5
      %v600 = vmul.f32 %v518, 0.5
      %v601 = vmul.f32 %v520, 0.5
      %v602 = vmul.f32 %v524, 0.5
      %v603 = vmul.f32 %v526, 0.5
      %v604 = vmul.f32 %v530, 0.5
      %v605 = vmul.f32 %v532, 0.5
      %v606 = vmul.f32 %v536, 0.5
      %v607 = vmul.f32 %v538, 0.5
      %v608 = vmul.f32 %v542, 0.5
      %v609 = vmul.f32 %v544, 0.5
      %v610 = vmul.f32 %v548, 0.5
      %v611 = vmul.f32 %v550, 0.5
      %v612 = vmul.f32 %v554, 0.5
      %v613 = vmul.f32 %v556, 0.5
      %v614 = vmul.f32 %v560, 0.5
      %v615 = vmul.f32 %v562, 0.5
      %v616 = vmul.f32 %v566, 0.5
      %v617 = vmul.f32 %v568, 0.5
      %v618 = vmul.f32 %v572, 0.5
      %v619 = vmul.f32 %v574, 0.5
      %v620 = vmul.f32 %v578, 0.5
      %v621 = vmul.f32 %v580, 0.5
      %v622 = vmul.f32 %v584, 0.5
      %v623 = vmul.f32 %v586, 0.5
      %v624 = vmul.f32 %v590, 0.5
      %v625 = vmul.f32 %v592, 0.5
      %v626 = vmul.f32 %v500, 0.044715
      %v627 = vmul.f32 %v502, 0.044715
      %v628 = vmul.f32 %v506, 0.044715
      %v629 = vmul.f32 %v508, 0.044715
      %v630 = vmul.f32 %v512, 0.044715
      %v631 = vmul.f32 %v514, 0.044715
      %v632 = vmul.f32 %v518, 0.044715
      %v633 = vmul.f32 %v520, 0.044715
      %v634 = vmul.f32 %v524, 0.044715
      %v635 = vmul.f32 %v526, 0.044715
      %v636 = vmul.f32 %v530, 0.044715
      %v637 = vmul.f32 %v532, 0.044715
      %v638 = vmul.f32 %v536, 0.044715
      %v639 = vmul.f32 %v538, 0.044715
      %v640 = vmul.f32 %v542, 0.044715
      %v641 = vmul.f32 %v544, 0.044715
      %v642 = vmul.f32 %v548, 0.044715
      %v643 = vmul.f32 %v550, 0.044715
      %v644 = vmul.f32 %v554, 0.044715
      %v645 = vmul.f32 %v556, 0.044715
      %v646 = vmul.f32 %v560, 0.044715
      %v647 = vmul.f32 %v562, 0.044715
      %v648 = vmul.f32 %v566, 0.044715
      %v649 = vmul.f32 %v568, 0.044715
      %v650 = vmul.f32 %v572, 0.044715
      %v651 = vmul.f32 %v574, 0.044715
      %v652 = vmul.f32 %v578, 0.044715
      %v653 = vmul.f32 %v580, 0.044715
      %v654 = vmul.f32 %v584, 0.044715
      %v655 = vmul.f32 %v586, 0.044715
      %v656 = vmul.f32 %v590, 0.044715
      %v657 = vmul.f32 %v592, 0.044715
      %v658 = vmul.f32 %v626, %v500
      %v659 = vmul.f32 %v627, %v502
      %v660 = vmul.f32 %v628, %v506
      %v661 = vmul.f32 %v629, %v508
      %v662 = vmul.f32 %v630, %v512
      %v663 = vmul.f32 %v631, %v514
      %v664 = vmul.f32 %v632, %v518
      %v665 = vmul.f32 %v633, %v520
      %v666 = vmul.f32 %v634, %v524
      %v667 = vmul.f32 %v635, %v526
      %v668 = vmul.f32 %v636, %v530
      %v669 = vmul.f32 %v637, %v532
      %v670 = vmul.f32 %v638, %v536
      %v671 = vmul.f32 %v639, %v538
      %v672 = vmul.f32 %v640, %v542
      %v673 = vmul.f32 %v641, %v544
      %v674 = vmul.f32 %v642, %v548
      %v675 = vmul.f32 %v643, %v550
      %v676 = vmul.f32 %v644, %v554
      %v677 = vmul.f32 %v645, %v556
      %v678 = vmul.f32 %v646, %v560
      %v679 = vmul.f32 %v647, %v562
      %v680 = vmul.f32 %v648, %v566
      %v681 = vmul.f32 %v649, %v568
      %v682 = vmul.f32 %v650, %v572
      %v683 = vmul.f32 %v651, %v574
      %v684 = vmul.f32 %v652, %v578
      %v685 = vmul.f32 %v653, %v580
      %v686 = vmul.f32 %v654, %v584
      %v687 = vmul.f32 %v655, %v586
      %v688 = vmul.f32 %v656, %v590
      %v689 = vmul.f32 %v657, %v592
      %v690 = vmul.f32 %v658, %v500
      %v691 = vmul.f32 %v659, %v502
      %v692 = vmul.f32 %v660, %v506
      %v693 = vmul.f32 %v661, %v508
      %v694 = vmul.f32 %v662, %v512
      %v695 = vmul.f32 %v663, %v514
      %v696 = vmul.f32 %v664, %v518
      %v697 = vmul.f32 %v665, %v520
      %v698 = vmul.f32 %v666, %v524
      %v699 = vmul.f32 %v667, %v526
      %v700 = vmul.f32 %v668, %v530
      %v701 = vmul.f32 %v669, %v532
      %v702 = vmul.f32 %v670, %v536
      %v703 = vmul.f32 %v671, %v538
      %v704 = vmul.f32 %v672, %v542
      %v705 = vmul.f32 %v673, %v544
      %v706 = vmul.f32 %v674, %v548
      %v707 = vmul.f32 %v675, %v550
      %v708 = vmul.f32 %v676, %v554
      %v709 = vmul.f32 %v677, %v556
      %v710 = vmul.f32 %v678, %v560
      %v711 = vmul.f32 %v679, %v562
      %v712 = vmul.f32 %v680, %v566
      %v713 = vmul.f32 %v681, %v568
      %v714 = vmul.f32 %v682, %v572
      %v715 = vmul.f32 %v683, %v574
      %v716 = vmul.f32 %v684, %v578
      %v717 = vmul.f32 %v685, %v580
      %v718 = vmul.f32 %v686, %v584
      %v719 = vmul.f32 %v687, %v586
      %v720 = vmul.f32 %v688, %v590
      %v721 = vmul.f32 %v689, %v592
      %v722 = vadd.f32 %v500, %v690
      %v723 = vadd.f32 %v502, %v691
      %v724 = vadd.f32 %v506, %v692
      %v725 = vadd.f32 %v508, %v693
      %v726 = vadd.f32 %v512, %v694
      %v727 = vadd.f32 %v514, %v695
      %v728 = vadd.f32 %v518, %v696
      %v729 = vadd.f32 %v520, %v697
      %v730 = vadd.f32 %v524, %v698
      %v731 = vadd.f32 %v526, %v699
      %v732 = vadd.f32 %v530, %v700
      %v733 = vadd.f32 %v532, %v701
      %v734 = vadd.f32 %v536, %v702
      %v735 = vadd.f32 %v538, %v703
      %v736 = vadd.f32 %v542, %v704
      %v737 = vadd.f32 %v544, %v705
      %v738 = vadd.f32 %v548, %v706
      %v739 = vadd.f32 %v550, %v707
      %v740 = vadd.f32 %v554, %v708
      %v741 = vadd.f32 %v556, %v709
      %v742 = vadd.f32 %v560, %v710
      %v743 = vadd.f32 %v562, %v711
      %v744 = vadd.f32 %v566, %v712
      %v745 = vadd.f32 %v568, %v713
      %v746 = vadd.f32 %v572, %v714
      %v747 = vadd.f32 %v574, %v715
      %v748 = vadd.f32 %v578, %v716
      %v749 = vadd.f32 %v580, %v717
      %v750 = vadd.f32 %v584, %v718
      %v751 = vadd.f32 %v586, %v719
      %v752 = vadd.f32 %v590, %v720
      %v753 = vadd.f32 %v592, %v721
      %v754 = vmul.f32 %v722, 0.7978846
      %v755 = vmul.f32 %v723, 0.7978846
      %v756 = vmul.f32 %v724, 0.7978846
      %v757 = vmul.f32 %v725, 0.7978846
      %v758 = vmul.f32 %v726, 0.7978846
      %v759 = vmul.f32 %v727, 0.7978846
      %v760 = vmul.f32 %v728, 0.7978846
      %v761 = vmul.f32 %v729, 0.7978846
      %v762 = vmul.f32 %v730, 0.7978846
      %v763 = vmul.f32 %v731, 0.7978846
      %v764 = vmul.f32 %v732, 0.7978846
      %v765 = vmul.f32 %v733, 0.7978846
      %v766 = vmul.f32 %v734, 0.7978846
      %v767 = vmul.f32 %v735, 0.7978846
      %v768 = vmul.f32 %v736, 0.7978846
      %v769 = vmul.f32 %v737, 0.7978846
      %v770 = vmul.f32 %v738, 0.7978846
      %v771 = vmul.f32 %v739, 0.7978846
      %v772 = vmul.f32 %v740, 0.7978846
      %v773 = vmul.f32 %v741, 0.7978846
      %v774 = vmul.f32 %v742, 0.7978846
      %v775 = vmul.f32 %v743, 0.7978846
      %v776 = vmul.f32 %v744, 0.7978846
      %v777 = vmul.f32 %v745, 0.7978846
      %v778 = vmul.f32 %v746, 0.7978846
      %v779 = vmul.f32 %v747, 0.7978846
      %v780 = vmul.f32 %v748, 0.7978846
      %v781 = vmul.f32 %v749, 0.7978846
      %v782 = vmul.f32 %v750, 0.7978846
      %v783 = vmul.f32 %v751, 0.7978846
      %v784 = vmul.f32 %v752, 0.7978846
      %v785 = vmul.f32 %v753, 0.7978846
      %v786 = vtanh.pop %v754
      %v787 = vtanh.pop %v755
      %v788 = vtanh.pop %v756
      %v789 = vtanh.pop %v757
      %v790 = vtanh.pop %v758
      %v791 = vtanh.pop %v759
      %v792 = vtanh.pop %v760
      %v793 = vtanh.pop %v761
      %v794 = vtanh.pop %v762
      %v795 = vtanh.pop %v763
      %v796 = vtanh.pop %v764
      %v797 = vtanh.pop %v765
      %v798 = vtanh.pop %v766
      %v799 = vtanh.pop %v767
      %v800 = vtanh.pop %v768
      %v801 = vtanh.pop %v769
      %v802 = vtanh.pop %v770
      %v803 = vtanh.pop %v771
      %v804 = vtanh.pop %v772
      %v805 = vtanh.pop %v773
      %v806 = vtanh.pop %v774
      %v807 = vtanh.pop %v775
      %v808 = vtanh.pop %v776
      %v809 = vtanh.pop %v777
      %v810 = vtanh.pop %v778
      %v811 = vtanh.pop %v779
      %v812 = vtanh.pop %v780
      %v813 = vtanh.pop %v781
      %v814 = vtanh.pop %v782
      %v815 = vtanh.pop %v783
      %v816 = vtanh.pop %v784
      %v817 = vtanh.pop %v785
      %v818 = vadd.f32 %v786, 1.0
      %v819 = vadd.f32 %v787, 1.0
      %v820 = vadd.f32 %v788, 1.0
      %v821 = vadd.f32 %v789, 1.0
      %v822 = vadd.f32 %v790, 1.0
      %v823 = vadd.f32 %v791, 1.0
      %v824 = vadd.f32 %v792, 1.0
      %v825 = vadd.f32 %v793, 1.0
      %v826 = vadd.f32 %v794, 1.0
      %v827 = vadd.f32 %v795, 1.0
      %v828 = vadd.f32 %v796, 1.0
      %v829 = vadd.f32 %v797, 1.0
      %v830 = vadd.f32 %v798, 1.0
      %v831 = vadd.f32 %v799, 1.0
      %v832 = vadd.f32 %v800, 1.0
      %v833 = vadd.f32 %v801, 1.0
      %v834 = vadd.f32 %v802, 1.0
      %v835 = vadd.f32 %v803, 1.0
      %v836 = vadd.f32 %v804, 1.0
      %v837 = vadd.f32 %v805, 1.0
      %v838 = vadd.f32 %v806, 1.0
      %v839 = vadd.f32 %v807, 1.0
      %v840 = vadd.f32 %v808, 1.0
      %v841 = vadd.f32 %v809, 1.0
      %v842 = vadd.f32 %v810, 1.0
      %v843 = vadd.f32 %v811, 1.0
      %v844 = vadd.f32 %v812, 1.0
      %v845 = vadd.f32 %v813, 1.0
      %v846 = vadd.f32 %v814, 1.0
      %v847 = vadd.f32 %v815, 1.0
      %v848 = vadd.f32 %v816, 1.0
      %v849 = vadd.f32 %v817, 1.0
      %v850 = vmul.f32 %v594, %v818
      %v851 = vmul.f32 %v595, %v819
      %v852 = vmul.f32 %v596, %v820
      %v853 = vmul.f32 %v597, %v821
      %v854 = vmul.f32 %v598, %v822
      %v855 = vmul.f32 %v599, %v823
      %v856 = vmul.f32 %v600, %v824
      %v857 = vmul.f32 %v601, %v825
      %v858 = vmul.f32 %v602, %v826
      %v859 = vmul.f32 %v603, %v827
      %v860 = vmul.f32 %v604, %v828
      %v861 = vmul.f32 %v605, %v829
      %v862 = vmul.f32 %v606, %v830
      %v863 = vmul.f32 %v607, %v831
      %v864 = vmul.f32 %v608, %v832
      %v865 = vmul.f32 %v609, %v833
      %v866 = vmul.f32 %v610, %v834
      %v867 = vmul.f32 %v611, %v835
      %v868 = vmul.f32 %v612, %v836
      %v869 = vmul.f32 %v613, %v837
      %v870 = vmul.f32 %v614, %v838
      %v871 = vmul.f32 %v615, %v839
      %v872 = vmul.f32 %v616, %v840
      %v873 = vmul.f32 %v617, %v841
      %v874 = vmul.f32 %v618, %v842
      %v875 = vmul.f32 %v619, %v843
      %v876 = vmul.f32 %v620, %v844
      %v877 = vmul.f32 %v621, %v845
      %v878 = vmul.f32 %v622, %v846
      %v879 = vmul.f32 %v623, %v847
      %v880 = vmul.f32 %v624, %v848
      %v881 = vmul.f32 %v625, %v849
      %v882 = vld [vmem:[%s3] sm:$0xff]
      %v883 = vld [vmem:[%s3 + $0x8] sm:$0xff]
      %v884 = vld [vmem:[%s3 + $0x10] sm:$0xff]
      %v885 = vld [vmem:[%s3 + $0x18] sm:$0xff]
      %v886 = vld [vmem:[%s4] sm:$0xff]
      %v887 = vld [vmem:[%s4 + $0x8] sm:$0xff]
      %v888 = vld [vmem:[%s4 + $0x10] sm:$0xff]
      %v889 = vld [vmem:[%s4 + $0x18] sm:$0xff]
      %891 = vset.pattern.permute.xlu0 0
      %892 = vperm.xlu0 %891, %v886
      %v893 = vpop.permute.xlu0 %892
      %896 = vset.pattern.permute.xlu0 0
      %897 = vperm.xlu0 %896, %v887
      %v898 = vpop.permute.xlu0 %897
      %901 = vset.pattern.permute.xlu0 0
      %902 = vperm.xlu0 %901, %v888
      %v903 = vpop.permute.xlu0 %902
      %906 = vset.pattern.permute.xlu0 0
      %907 = vperm.xlu0 %906, %v889
      %v908 = vpop.permute.xlu0 %907
      %910 = vmatprep.subr.mxu0 %v881
      %911 = vmatpush1.msra.mxu0 %v880
      %912 = vmatprep.subr.mxu0 %v879
      %913 = vmatpush1.msra.mxu0 %v878
      %914 = vmatprep.subr.mxu0 %v877
      %915 = vmatpush1.msra.mxu0 %v876
      %916 = vmatprep.subr.mxu0 %v875
      %917 = vmatpush1.msra.mxu0 %v874
      %918 = vmatprep.subr.mxu0 %v873
      %919 = vmatpush1.msra.mxu0 %v872
      %920 = vmatprep.subr.mxu0 %v871
      %921 = vmatpush1.msra.mxu0 %v870
      %922 = vmatprep.subr.mxu0 %v869
      %923 = vmatpush1.msra.mxu0 %v868
      %924 = vmatprep.subr.mxu0 %v867
      %925 = vmatpush1.msra.mxu0 %v866
      %926 = vmatprep.subr.mxu0 %v865
      %927 = vmatpush1.msra.mxu0 %v864
      %928 = vmatprep.subr.mxu0 %v863
      %929 = vmatpush1.msra.mxu0 %v862
      %930 = vmatprep.subr.mxu0 %v861
      %931 = vmatpush1.msra.mxu0 %v860
      %932 = vmatprep.subr.mxu0 %v859
      %933 = vmatpush1.msra.mxu0 %v858
      %934 = vmatprep.subr.mxu0 %v857
      %935 = vmatpush1.msra.mxu0 %v856
      %936 = vmatprep.subr.mxu0 %v855
      %937 = vmatpush1.msra.mxu0 %v854
      %938 = vmatprep.subr.mxu0 %v853
      %939 = vmatpush1.msra.mxu0 %v852
      %940 = vmatprep.subr.mxu0 %v851
      %941 = vmatpush1.msra.mxu0 %v850
      %942 = vmatprep.subr.mxu0 0.0
      %943 = vmatpush2.msra.mxu0 0.0
      %944 = vmatprep.subr.mxu0 0.0
      %945 = vmatpush2.msra.mxu0 0.0
      %946 = vmatprep.subr.mxu0 0.0
      %947 = vmatpush2.msra.mxu0 0.0
      %948 = vmatprep.subr.mxu0 0.0
      %949 = vmatpush2.msra.mxu0 0.0
      %950 = vmatprep.subr.mxu0 0.0
      %951 = vmatpush2.msra.mxu0 0.0
      %952 = vmatprep.subr.mxu0 0.0
      %953 = vmatpush2.msra.mxu0 0.0
      %954 = vmatprep.subr.mxu0 0.0
      %955 = vmatpush2.msra.mxu0 0.0
      %956 = vmatprep.subr.mxu0 0.0
      %957 = vmatpush2.msra.mxu0 0.0
      %958 = vmatprep.subr.mxu0 0.0
      %959 = vmatpush2.msra.mxu0 0.0
      %960 = vmatprep.subr.mxu0 0.0
      %961 = vmatpush2.msra.mxu0 0.0
      %962 = vmatprep.subr.mxu0 0.0
      %963 = vmatpush2.msra.mxu0 0.0
      %964 = vmatprep.subr.mxu0 0.0
      %965 = vmatpush2.msra.mxu0 0.0
      %966 = vmatprep.subr.mxu0 0.0
      %967 = vmatpush2.msra.mxu0 0.0
      %968 = vmatprep.subr.mxu0 0.0
      %969 = vmatpush2.msra.mxu0 0.0
      %970 = vmatprep.subr.mxu0 0.0
      %971 = vmatpush2.msra.mxu0 0.0
      %972 = vmatprep.subr.mxu0 0.0
      %973 = vmatpush2.msra.mxu0 0.0
      %974 = vmatprep.mubr.f32.mxu0 0.0
      %975 = vmatmul.mubr.f32.gmra.mxu0 %v882
      %v976 = vpop.f32.mrf.mxu0
      %v977 = vadd.f32 %v893, %v976
      %v978 = vpop.f32.mrf.mxu0
      %v979 = vadd.f32 %v893, %v978
      %980 = vmatprep.mubr.f32.mxu0 0.0
      %981 = vmatmul.mubr.f32.gmra.mxu0 %v883
      %v982 = vpop.f32.mrf.mxu0
      %v983 = vadd.f32 %v898, %v982
      %v984 = vpop.f32.mrf.mxu0
      %v985 = vadd.f32 %v898, %v984
      %986 = vmatprep.mubr.f32.mxu0 0.0
      %987 = vmatmul.mubr.f32.gmra.mxu0 %v884
      %v988 = vpop.f32.mrf.mxu0
      %v989 = vadd.f32 %v903, %v988
      %v990 = vpop.f32.mrf.mxu0
      %v991 = vadd.f32 %v903, %v990
      %992 = vmatprep.mubr.f32.mxu0 0.0
      %993 = vmatmul.mubr.f32.gmra.mxu0 %v885
      %v994 = vpop.f32.mrf.mxu0
      %v995 = vadd.f32 %v908, %v994
      %v996 = vpop.f32.mrf.mxu0
      %v997 = vadd.f32 %v908, %v996
      %998 = vdwg.mxu0
      %999 = vst [vmem:[%s262] sm:$0xff] %v977
      %1000 = vst [vmem:[%s262 + $0x8] sm:$0xff] %v979
      %1001 = vst [vmem:[%s262 + $0x10] sm:$0xff] %v983
      %1002 = vst [vmem:[%s262 + $0x18] sm:$0xff] %v985
      %1003 = vst [vmem:[%s262 + $0x20] sm:$0xff] %v989
      %1004 = vst [vmem:[%s262 + $0x28] sm:$0xff] %v991
      %1005 = vst [vmem:[%s262 + $0x30] sm:$0xff] %v995
      %1006 = vst [vmem:[%s262 + $0x38] sm:$0xff] %v997
      %s1007 = smul.u32 2, %s21
      %p1008 = scmp.lt.s32.totalorder %s20, 1
      %s1009 = scalar_select %p1008, %s20, 1
      %p1010 = scmp.lt.s32.totalorder %s1007, 1
      %s1011 = scalar_select %p1010, %s1007, 1
      %s1012 = smul.addr %s1009, 8
      %s1013 = sadd.s32 %s1011, %s1012
      %s1014 = smul.addr %s1013, 8
      %s1015 = scalar_lea.vmem %s5, %s1014
      // Predicated region
      $region41: #{mlp_forward.1} parent=39 // pred_check
        %p1016 = pneg %p160
      $region42: #{mlp_forward.1} parent=39 // pred_check_branch
        %1018 = sbr.rel (%p1016) target = $region44
      $region43: #{mlp_forward.1} parent=39 // pred_region
        %s1019 = smul.u32 2, %s21
      $region44: #{mlp_forward.1} parent=39 // pred_fallthru
        _
    $region40: #{mlp_forward.1} parent=5 // pred_fallthru
      _
    %p1020 = scmp.le.s32.totalorder 2, %s11
    // Predicated region
    $region45: #{mlp_forward.1} parent=5 // pred_check
      %p1021 = pneg %p1020
    $region46: #{mlp_forward.1} parent=5 // pred_check_branch
      %1023 = sbr.rel (%p1021) target = $region48
    $region47: #{mlp_forward.1} parent=5 // pred_region
      %s1024 = ssub.s32 %s11, 2
      // Predicated region
      $region49: #{mlp_forward.1} parent=47 // pred_check
        %p1025 = pneg %p166
      $region50: #{mlp_forward.1} parent=47 // pred_check_branch
        %1027 = sbr.rel (%p1025) target = $region52
      $region51: #{mlp_forward.1} parent=47 // pred_region
        %s1028 = smul.u32 2, %s23
        %p1029 = scmp.lt.s32.totalorder %s22, 1
        %s1030 = scalar_select %p1029, %s22, 1
        %p1031 = scmp.lt.s32.totalorder %s1028, 1
        %s1032 = scalar_select %p1031, %s1028, 1
        %s1033 = smul.addr %s1030, 8
        %s1034 = sadd.s32 %s1032, %s1033
        %s1035 = smul.addr %s1034, 8
        %s1036 = scalar_lea.vmem %s5, %s1035
      $region52: #{mlp_forward.1} parent=47 // pred_fallthru
        _
    $region48: #{mlp_forward.1} parent=5 // pred_fallthru
      _
  $region6: #{mlp_forward.1} parent=0 // loop_footer
    %s15 = sadd.s32 1, %s11
  $region7: #{mlp_forward.1} parent=0 // loop_footer_branch
    %10 = sbr.rel target = $region3
  $region8: #{mlp_forward.1} parent=0 // loop_exit
    _

</llo_original>
